<compile_context>
chip_gen: v7x
topology: tpu7x:2x2x1
jax: 0.10.0
libtpu: 0.0.40
codegen_flags: <defaults>
</compile_context>

<pallas_src>
import jax
import jax.numpy as jnp
from jax.experimental import pallas as pl
from jax.experimental.pallas import tpu as pltpu

HIDDEN = 128
OUT_W = 8  # minimum f32 sublane-tile width; last dim == full array dim, so
           # the (8,128) BlockSpec rule is satisfied and writeback is tiny.


def critic_kernel(x_ref, w1_ref, b1_ref, w2_ref, b2_ref, w3_ref, b3_ref, o_ref):
    """Fused 3-layer MLP on one batch tile:
       relu(x@W1+b1) -> relu(@W2+b2) -> lane-reduce(h2 * w3_row) + b3.

    Layers 1-2 use bf16 MXU operands with f32 accumulation; bias/ReLU math and
    the 128->1 head stay entirely in f32 (v5e VPU has no bf16 path, and the
    head never touches the MXU)."""
    cdt = w1_ref.dtype
    x = x_ref[...].astype(cdt)
    h1 = jnp.dot(x, w1_ref[...], preferred_element_type=jnp.float32) + b1_ref[...]
    h1 = jnp.maximum(h1, 0.0)
    h2 = jnp.dot(h1.astype(cdt), w2_ref[...],
                 preferred_element_type=jnp.float32) + b2_ref[...]
    h2 = jnp.maximum(h2, 0.0)
    # Layer 3 (128 -> 1): f32 VPU mul + XLU lane reduce; result (tile_b, 1)
    # broadcast across the 8-wide output tile (wrapper slices column 0).
    v = jnp.sum(h2 * w3_ref[...], axis=-1, keepdims=True)
    o_ref[...] = v + b3_ref[...]


def critic_forward(x, kernel_params, *, tile_b=2048):
    """x: (B, state_size) f32 (bf16 also accepted if the producer already has
    it -- the kernel casts operands internally). Returns (B, 1) f32 values."""
    w1, b1, w2, b2, w3r, b3r = kernel_params
    B, S = x.shape

    # Large default tile amortizes per-grid-step overhead; clamp (multiple of
    # 8 sublanes) so tiny batches run as a single step.
    tile_b = max(8, min(tile_b, ((B + 7) // 8) * 8))
    b_pad = pl.cdiv(B, tile_b) * tile_b
    if b_pad != B:
        x = jnp.pad(x, ((0, b_pad - B), (0, 0)))
    grid = (b_pad // tile_b,)

    param_bytes = sum(int(a.size) * a.dtype.itemsize for a in kernel_params)
    flops = 2 * b_pad * (S * HIDDEN + HIDDEN * HIDDEN) + 3 * b_pad * HIDDEN
    bytes_accessed = (b_pad * S * x.dtype.itemsize
                      + param_bytes
                      + b_pad * OUT_W * 4)

    # VMEM budget from actual tiles: double-buffered x/out tiles + resident
    # weights + f32 h1/h2 intermediates, with 2x headroom; floor 16 MiB /
    # ceiling 32 MiB keeps it valid on every generation including v7x.
    tile_vmem = (2 * tile_b * S * x.dtype.itemsize
                 + 2 * tile_b * OUT_W * 4
                 + 2 * param_bytes
                 + 4 * tile_b * HIDDEN * 4)
    vmem_limit = int(min(32 * 1024 * 1024, max(16 * 1024 * 1024, 2 * tile_vmem)))

    out = pl.pallas_call(
        critic_kernel,
        out_shape=jax.ShapeDtypeStruct((b_pad, OUT_W), jnp.float32),
        grid_spec=pltpu.PrefetchScalarGridSpec(
            num_scalar_prefetch=0,
            grid=grid,
            in_specs=[
                # x: pipelined per batch tile (double-buffered by Pallas)
                pl.BlockSpec((tile_b, S), lambda i: (i, 0)),
                # weights/biases: constant index_map -> VMEM-resident, DMA'd once
                pl.BlockSpec((S, HIDDEN), lambda i: (0, 0)),
                pl.BlockSpec((1, HIDDEN), lambda i: (0, 0)),
                pl.BlockSpec((HIDDEN, HIDDEN), lambda i: (0, 0)),
                pl.BlockSpec((1, HIDDEN), lambda i: (0, 0)),
                pl.BlockSpec((1, HIDDEN), lambda i: (0, 0)),   # w3 row (f32)
                pl.BlockSpec((1, OUT_W), lambda i: (0, 0)),    # b3 broadcast row
            ],
            out_specs=pl.BlockSpec((tile_b, OUT_W), lambda i: (i, 0)),
        ),
        compiler_params=pltpu.CompilerParams(
            # Batch tiles are independent.
            # TODO(synk): on v7x, shard the batch axis across both TensorCores
            # via pltpu.CORE_PARALLEL / pl.core_map (plain "parallel" does not
            # split cores); gate on chip version so v5e/v6e are untouched.
            dimension_semantics=("parallel",),
            vmem_limit_bytes=vmem_limit,
        ),
        cost_estimate=pl.CostEstimate(
            flops=flops, transcendentals=0, bytes_accessed=bytes_accessed),
    )(x, w1, b1, w2, b2, w3r, b3r)

    return out[:B, :1]


def init_params(key, state_size, action_size=None, hidden=HIDDEN):
    # Deterministic init mimicking PyTorch nn.Linear default:
    # U(-1/sqrt(fan_in), 1/sqrt(fan_in)). Weights stored transposed: (in, out).
    del action_size  # unused by forward (matches the PyTorch module)
    ks = jax.random.split(key, 6)

    def lin(kw, kb, fan_in, fan_out):
        bound = 1.0 / jnp.sqrt(fan_in)
        w = jax.random.uniform(kw, (fan_in, fan_out), jnp.float32, -bound, bound)
        b = jax.random.uniform(kb, (1, fan_out), jnp.float32, -bound, bound)
        return w, b

    w1, b1 = lin(ks[0], ks[1], state_size, hidden)
    w2, b2 = lin(ks[2], ks[3], hidden, hidden)
    w3, b3 = lin(ks[4], ks[5], hidden, 1)
    return (w1, b1, w2, b2, w3, b3)


def prepare_params(params, compute_dtype=jnp.bfloat16):
    """One-time conversion of logical f32 params to the kernel layout:
    bf16 MXU operands for layers 1-2 (f32 biases), and an f32 (1,128) row +
    (1,OUT_W) bias slab for the VPU/XLU head."""
    w1, b1, w2, b2, w3, b3 = params
    w3_row = w3.reshape(1, HIDDEN).astype(jnp.float32)          # (128,1) -> (1,128)
    b3_row = jnp.broadcast_to(b3.astype(jnp.float32), (1, OUT_W))
    return (w1.astype(compute_dtype), b1,
            w2.astype(compute_dtype), b2,
            w3_row, b3_row)


def reference_forward(x, params, compute_dtype=jnp.bfloat16):
    """Plain-JAX reference with the same rounding as the kernel
    (bf16 operands for layers 1-2, full f32 for the head)."""
    w1, b1, w2, b2, w3, b3 = params
    h = jnp.dot(x.astype(compute_dtype), w1.astype(compute_dtype),
                preferred_element_type=jnp.float32) + b1
    h = jnp.maximum(h, 0.0)
    h = jnp.dot(h.astype(compute_dtype), w2.astype(compute_dtype),
                preferred_element_type=jnp.float32) + b2
    h = jnp.maximum(h, 0.0)
    return h @ w3 + b3


if __name__ == "__main__":
    key = jax.random.PRNGKey(0)
    state_size = 32
    action_size = 4  # unused by forward (matches the PyTorch module)
    batch = 8

    k_in, k_par, k_big = jax.random.split(key, 3)
    x = jax.random.normal(k_in, (batch, state_size), dtype=jnp.float32)
    params = init_params(k_par, state_size, action_size)
    kernel_params = prepare_params(params)

    out = critic_forward(x, kernel_params)
    jax.block_until_ready(out)

    # Rounding-matched reference.
    ref = reference_forward(x, params)
    assert out.shape == (batch, 1)
    assert jnp.allclose(out, ref, atol=5e-3, rtol=5e-3), \
        float(jnp.max(jnp.abs(out - ref)))

    # Pure-f32 PyTorch-style reference: only bf16 operand rounding separates us.
    w1, b1, w2, b2, w3, b3 = params
    ref32 = jnp.maximum(x @ w1 + b1, 0.0)
    ref32 = jnp.maximum(ref32 @ w2 + b2, 0.0)
    ref32 = ref32 @ w3 + b3
    assert jnp.allclose(out, ref32, atol=5e-2, rtol=5e-2)

    # Multi-tile + ragged-batch path (grid of 3, last tile zero-padded).
    x_big = jax.random.normal(k_big, (300, state_size), dtype=jnp.float32)
    out_big = critic_forward(x_big, kernel_params, tile_b=128)
    jax.block_until_ready(out_big)
    ref_big = reference_forward(x_big, params)
    assert out_big.shape == (300, 1)
    assert jnp.allclose(out_big, ref_big, atol=5e-3, rtol=5e-3)

    print("KERNEL_OK")
</pallas_src>

<mosaic_0001>
module attributes {stable_mosaic.version = 11 : i64} {
  func.func @critic_kernel(%arg0: i32, %arg1: memref<8x32xf32, #tpu.memory_space<vmem>>, %arg2: memref<32x128xbf16, #tpu.memory_space<vmem>>, %arg3: memref<1x128xf32, #tpu.memory_space<vmem>>, %arg4: memref<128x128xbf16, #tpu.memory_space<vmem>>, %arg5: memref<1x128xf32, #tpu.memory_space<vmem>>, %arg6: memref<1x128xf32, #tpu.memory_space<vmem>>, %arg7: memref<1x8xf32, #tpu.memory_space<vmem>>, %arg8: memref<8x8xf32, #tpu.memory_space<vmem>>) attributes {dimension_semantics = [#tpu.dimension_semantics<parallel>], iteration_bounds = array<i64: 1>, scalar_prefetch = 0 : i64, scratch_operands = 0 : i64, tpu.core_type = #tpu.core_type<tc>, window_params = [{transform_indices = @transform_0, window_bounds = array<i64: 8, 32>}, {pipeline_mode = #tpu.pipeline_mode<synchronous>, transform_indices = @transform_1, window_bounds = array<i64: 32, 128>}, {pipeline_mode = #tpu.pipeline_mode<synchronous>, transform_indices = @transform_2, window_bounds = array<i64: 1, 128>}, {pipeline_mode = #tpu.pipeline_mode<synchronous>, transform_indices = @transform_3, window_bounds = array<i64: 128, 128>}, {pipeline_mode = #tpu.pipeline_mode<synchronous>, transform_indices = @transform_4, window_bounds = array<i64: 1, 128>}, {pipeline_mode = #tpu.pipeline_mode<synchronous>, transform_indices = @transform_5, window_bounds = array<i64: 1, 128>}, {pipeline_mode = #tpu.pipeline_mode<synchronous>, transform_indices = @transform_6, window_bounds = array<i64: 1, 8>}, {transform_indices = @transform_7, window_bounds = array<i64: 8, 8>}]} {
    %c0 = arith.constant 0 : index
    %c0_0 = arith.constant 0 : index
    %0 = vector.load %arg1[%c0, %c0_0] : memref<8x32xf32, #tpu.memory_space<vmem>>, vector<8x32xf32>
    %1 = arith.truncf %0 : vector<8x32xf32> to vector<8x32xbf16>
    %c0_1 = arith.constant 0 : index
    %c0_2 = arith.constant 0 : index
    %2 = vector.load %arg2[%c0_1, %c0_2] : memref<32x128xbf16, #tpu.memory_space<vmem>>, vector<32x128xbf16>
    %cst = arith.constant dense<0.000000e+00> : vector<8x128xf32>
    %3 = tpu.matmul %1, %2, %cst {dimension_numbers = #tpu.dot_dimension_numbers<[1], [0], [0], [1], [0, 0, 1, 1], [], []>} : vector<8x32xbf16>, vector<32x128xbf16>, vector<8x128xf32> -> vector<8x128xf32>
    %c0_3 = arith.constant 0 : index
    %c0_4 = arith.constant 0 : index
    %4 = vector.load %arg3[%c0_3, %c0_4] : memref<1x128xf32, #tpu.memory_space<vmem>>, vector<1x128xf32>
    %5 = vector.broadcast %4 : vector<1x128xf32> to vector<8x128xf32>
    %6 = arith.addf %3, %5 : vector<8x128xf32>
    %cst_5 = arith.constant 0.000000e+00 : f32
    %7 = vector.broadcast %cst_5 : f32 to vector<8x128xf32>
    %8 = arith.maximumf %6, %7 : vector<8x128xf32>
    %9 = arith.truncf %8 : vector<8x128xf32> to vector<8x128xbf16>
    %c0_6 = arith.constant 0 : index
    %c0_7 = arith.constant 0 : index
    %10 = vector.load %arg4[%c0_6, %c0_7] : memref<128x128xbf16, #tpu.memory_space<vmem>>, vector<128x128xbf16>
    %cst_8 = arith.constant dense<0.000000e+00> : vector<8x128xf32>
    %11 = tpu.matmul %9, %10, %cst_8 {dimension_numbers = #tpu.dot_dimension_numbers<[1], [0], [0], [1], [0, 0, 1, 1], [], []>} : vector<8x128xbf16>, vector<128x128xbf16>, vector<8x128xf32> -> vector<8x128xf32>
    %c0_9 = arith.constant 0 : index
    %c0_10 = arith.constant 0 : index
    %12 = vector.load %arg5[%c0_9, %c0_10] : memref<1x128xf32, #tpu.memory_space<vmem>>, vector<1x128xf32>
    %13 = vector.broadcast %12 : vector<1x128xf32> to vector<8x128xf32>
    %14 = arith.addf %11, %13 : vector<8x128xf32>
    %cst_11 = arith.constant 0.000000e+00 : f32
    %15 = vector.broadcast %cst_11 : f32 to vector<8x128xf32>
    %16 = arith.maximumf %14, %15 : vector<8x128xf32>
    %c0_12 = arith.constant 0 : index
    %c0_13 = arith.constant 0 : index
    %17 = vector.load %arg6[%c0_12, %c0_13] : memref<1x128xf32, #tpu.memory_space<vmem>>, vector<1x128xf32>
    %18 = vector.broadcast %17 : vector<1x128xf32> to vector<8x128xf32>
    %19 = arith.mulf %16, %18 : vector<8x128xf32>
    %cst_14 = arith.constant dense<0.000000e+00> : vector<8xf32>
    %20 = vector.multi_reduction <add>, %19, %cst_14 [1] : vector<8x128xf32> to vector<8xf32>
    %21 = vector.shape_cast %20 : vector<8xf32> to vector<8x1xf32>
    %c0_15 = arith.constant 0 : index
    %c0_16 = arith.constant 0 : index
    %22 = vector.load %arg7[%c0_15, %c0_16] : memref<1x8xf32, #tpu.memory_space<vmem>>, vector<1x8xf32>
    %23 = vector.broadcast %21 : vector<8x1xf32> to vector<8x8xf32>
    %24 = vector.broadcast %22 : vector<1x8xf32> to vector<8x8xf32>
    %25 = arith.addf %23, %24 : vector<8x8xf32>
    %c0_17 = arith.constant 0 : index
    %c0_18 = arith.constant 0 : index
    %26 = vector.load %arg8[%c0_17, %c0_18] : memref<8x8xf32, #tpu.memory_space<vmem>>, vector<8x8xf32>
    tpu.vector_store %arg8[%c0_17, %c0_18], %25 {strides = array<i32>} : memref<8x8xf32, #tpu.memory_space<vmem>>, vector<8x8xf32>,
    return
  }
  func.func @transform_0(%arg0: i32) -> (i32, i32) {
    %c0_i32 = arith.constant 0 : i32
    %c0_i32_0 = arith.constant 0 : i32
    return %arg0, %c0_i32 : i32, i32
  }
  func.func @transform_1(%arg0: i32) -> (i32, i32) {
    %c0_i32 = arith.constant 0 : i32
    %c0_i32_0 = arith.constant 0 : i32
    %c0_i32_1 = arith.constant 0 : i32
    return %c0_i32, %c0_i32_0 : i32, i32
  }
  func.func @transform_2(%arg0: i32) -> (i32, i32) {
    %c0_i32 = arith.constant 0 : i32
    %c0_i32_0 = arith.constant 0 : i32
    %c0_i32_1 = arith.constant 0 : i32
    return %c0_i32, %c0_i32_0 : i32, i32
  }
  func.func @transform_3(%arg0: i32) -> (i32, i32) {
    %c0_i32 = arith.constant 0 : i32
    %c0_i32_0 = arith.constant 0 : i32
    %c0_i32_1 = arith.constant 0 : i32
    return %c0_i32, %c0_i32_0 : i32, i32
  }
  func.func @transform_4(%arg0: i32) -> (i32, i32) {
    %c0_i32 = arith.constant 0 : i32
    %c0_i32_0 = arith.constant 0 : i32
    %c0_i32_1 = arith.constant 0 : i32
    return %c0_i32, %c0_i32_0 : i32, i32
  }
  func.func @transform_5(%arg0: i32) -> (i32, i32) {
    %c0_i32 = arith.constant 0 : i32
    %c0_i32_0 = arith.constant 0 : i32
    %c0_i32_1 = arith.constant 0 : i32
    return %c0_i32, %c0_i32_0 : i32, i32
  }
  func.func @transform_6(%arg0: i32) -> (i32, i32) {
    %c0_i32 = arith.constant 0 : i32
    %c0_i32_0 = arith.constant 0 : i32
    %c0_i32_1 = arith.constant 0 : i32
    return %c0_i32, %c0_i32_0 : i32, i32
  }
  func.func @transform_7(%arg0: i32) -> (i32, i32) {
    %c0_i32 = arith.constant 0 : i32
    %c0_i32_0 = arith.constant 0 : i32
    return %arg0, %c0_i32 : i32, i32
  }
}

</mosaic_0001>

<llo_original>
// kernel: tpu_custom_call.1
$region0: #{tpu_custom_call.1}
  #allocation0 [shape = 'u32[]', space=smem, size = 0x4, offset = 0x4, fixed_abs, tag = 'smem constant byte address 0x4 - core index']
  #allocation1 [shape = 'u32[144,128]{1,0:T(1,128)}', space=vmem, size = 0x12000, scoped, tag = 'internal scratch']
  %s0 = inlined_call_operand.hbm [shape: f32[8,32], index: 0, kind: input, shape index: {}]
  %s1 = inlined_call_operand.hbm [shape: bf16[32,128], index: 1, kind: input, shape index: {}]
  %s2 = inlined_call_operand.vmem [shape: f32[1,128], index: 2, kind: input, shape index: {}]
  %s3 = inlined_call_operand.hbm [shape: bf16[128,128], index: 3, kind: input, shape index: {}]
  %s4 = inlined_call_operand.vmem [shape: f32[1,128], index: 4, kind: input, shape index: {}]
  %s5 = inlined_call_operand.vmem [shape: f32[1,128], index: 5, kind: input, shape index: {}]
  %s6 = inlined_call_operand.vmem [shape: f32[1,8], index: 6, kind: input, shape index: {}]
  %s7 = inlined_call_operand.hbm [shape: f32[8,8], index: 7, kind: output, shape index: {}]
  %s8 = sld [smem:[#allocation0]]
  $region50: #{tpu_custom_call.1} parent=0
    _
  %s10 = ssub.s32 1, %s8
  %s11 = scalar_select 0, %s10, %s8
  $region1: #{tpu_custom_call.1} parent=0
    #allocation2 [shape = 'u8[4096]{0}', space=vmem, size = 0x1000, scoped, tag = 'input window, operand 0, single buffered']
    #allocation3 [shape = 's32[1]{0}', space=sflag, size = 0x4, scoped, tag = 'scoped memory for tpu_custom_call.1']
    #allocation4 [shape = 's32[1]{0}', space=sflag, size = 0x4, scoped, tag = 'scoped memory for tpu_custom_call.1']
    #allocation5 [shape = 'u8[8192]{0}', space=vmem, size = 0x2000, scoped, tag = 'input window, operand 1, single buffered']
    #allocation6 [shape = 's32[1]{0}', space=sflag, size = 0x4, scoped, tag = 'scoped memory for tpu_custom_call.1']
    #allocation7 [shape = 'u8[32768]{0}', space=vmem, size = 0x8000, scoped, tag = 'input window, operand 3, single buffered']
    #allocation8 [shape = 'u8[4096]{0}', space=vmem, size = 0x1000, scoped, tag = 'output window, operand 0, single buffered']
    %12 = vsyncpa [#allocation3], 0
    %13 = vsyncpa [#allocation6], 0
    %14 = vsyncpa [#allocation4], 0
    // Predicated region
    $region2: #{tpu_custom_call.1} parent=1 // pred_check
      _
    $region3: #{tpu_custom_call.1} parent=1 // pred_check_branch
      %16 = sbr.rel (0) target = $region5
    $region4: #{tpu_custom_call.1} parent=1 // pred_region
      %s18 = ssub.s32 128, 128
      %19 = vsyncadd [#allocation3], %s18
      %s21 = sshll.u32 [#allocation2], 4
      %s22 = int_to_ptr.vmem [resolvable:$true] %s21
      %24 = dma.hbm_to_vmem [thread:$0]  %s0, 128, %s22, [#allocation3]
    $region5: #{tpu_custom_call.1} parent=1 // pred_fallthru
      _
    // Predicated region
    $region6: #{tpu_custom_call.1} parent=1 // pred_check
      _
    $region7: #{tpu_custom_call.1} parent=1 // pred_check_branch
      %26 = sbr.rel (0) target = $region9
    $region8: #{tpu_custom_call.1} parent=1 // pred_region
      %s28 = ssub.s32 256, 256
      %29 = vsyncadd [#allocation6], %s28
      %s30 = sshll.u32 [#allocation5], 4
      %s31 = int_to_ptr.vmem [resolvable:$true] %s30
      %36 = dma.hbm_to_vmem [thread:$0]  %s1, 256, %s31, [#allocation6], 64, 64, 4
    $region9: #{tpu_custom_call.1} parent=1 // pred_fallthru
      _
    // Predicated region
    $region10: #{tpu_custom_call.1} parent=1 // pred_check
      _
    $region11: #{tpu_custom_call.1} parent=1 // pred_check_branch
      %38 = sbr.rel (0) target = $region13
    $region12: #{tpu_custom_call.1} parent=1 // pred_region
      _
    $region13: #{tpu_custom_call.1} parent=1 // pred_fallthru
      _
    // Predicated region
    $region14: #{tpu_custom_call.1} parent=1 // pred_check
      _
    $region15: #{tpu_custom_call.1} parent=1 // pred_check_branch
      %40 = sbr.rel (0) target = $region17
    $region16: #{tpu_custom_call.1} parent=1 // pred_region
      %s42 = ssub.s32 1024, 1024
      %43 = vsyncadd [#allocation6], %s42
      %s44 = sshll.u32 [#allocation7], 4
      %s45 = int_to_ptr.vmem [resolvable:$true] %s44
      %50 = dma.hbm_to_vmem [thread:$0]  %s3, 1024, %s45, [#allocation6], 64, 64, 4
    $region17: #{tpu_custom_call.1} parent=1 // pred_fallthru
      _
    // Predicated region
    $region18: #{tpu_custom_call.1} parent=1 // pred_check
      _
    $region19: #{tpu_custom_call.1} parent=1 // pred_check_branch
      %52 = sbr.rel (0) target = $region21
    $region20: #{tpu_custom_call.1} parent=1 // pred_region
      _
    $region21: #{tpu_custom_call.1} parent=1 // pred_fallthru
      _
    // Predicated region
    $region22: #{tpu_custom_call.1} parent=1 // pred_check
      _
    $region23: #{tpu_custom_call.1} parent=1 // pred_check_branch
      %54 = sbr.rel (0) target = $region25
    $region24: #{tpu_custom_call.1} parent=1 // pred_region
      _
    $region25: #{tpu_custom_call.1} parent=1 // pred_fallthru
      _
    // Predicated region
    $region26: #{tpu_custom_call.1} parent=1 // pred_check
      _
    $region27: #{tpu_custom_call.1} parent=1 // pred_check_branch
      %56 = sbr.rel (0) target = $region29
    $region28: #{tpu_custom_call.1} parent=1 // pred_region
      _
    $region29: #{tpu_custom_call.1} parent=1 // pred_fallthru
      _
    // Predicated region
    $region30: #{tpu_custom_call.1} parent=1 // pred_check
      _
    $region31: #{tpu_custom_call.1} parent=1 // pred_check_branch
      %58 = sbr.rel (0) target = $region33
    $region32: #{tpu_custom_call.1} parent=1 // pred_region
      %59 = dma.done [#allocation3], 128
    $region33: #{tpu_custom_call.1} parent=1 // pred_fallthru
      _
    // Predicated region
    $region34: #{tpu_custom_call.1} parent=1 // pred_check
      _
    $region35: #{tpu_custom_call.1} parent=1 // pred_check_branch
      %61 = sbr.rel (0) target = $region37
    $region36: #{tpu_custom_call.1} parent=1 // pred_region
      %62 = dma.done [#allocation6], 256
    $region37: #{tpu_custom_call.1} parent=1 // pred_fallthru
      _
    // Predicated region
    $region38: #{tpu_custom_call.1} parent=1 // pred_check
      _
    $region39: #{tpu_custom_call.1} parent=1 // pred_check_branch
      %64 = sbr.rel (0) target = $region41
    $region40: #{tpu_custom_call.1} parent=1 // pred_region
      %65 = dma.done [#allocation6], 1024
    $region41: #{tpu_custom_call.1} parent=1 // pred_fallthru
      _
    %v67 = vld [vmem:[#allocation2] sm:$0xff]
    %v68 = vpack.c.bf16 %v67, %v67
    %v69 = vld [vmem:[#allocation5] sm:$0xf]
    %v70 = vld [vmem:[#allocation5 + $0x4] sm:$0xf]
    %v71 = vld [vmem:[#allocation5 + $0x8] sm:$0xf]
    %v72 = vld [vmem:[#allocation5 + $0xc] sm:$0xf]
    %v73 = vld [vmem:[%s2] sm:$0x1]
    %v75 = vlaneseq
    %v76 = vshrl.u32 %v75, 7
    %v77 = vsub.s32 0, %v76
    %v78 = vrot.slane %v73, %v77
    %v84 = vunpack.c.l.b16 %v69
    %v85 = vunpack.c.l.b16 %v70
    %v86 = vunpack.c.l.b16 %v71
    %v87 = vunpack.c.l.b16 %v72
    %v88 = vpack.c.b16 %v85, %v84
    %v89 = vpack.c.b16 %v87, %v86
    %vm92 = vcmask 261120
    %v94 = vsel %vm92, %v68, 0
    %96 = vmatprep.subr.bf16.mxu0 0
    %97 = vmatpush1.bf16.msra.mxu0 %v88
    %98 = vmatprep.subr.bf16.mxu0 0
    %99 = vmatpush1.bf16.msra.mxu0 %v89
    %100 = vmatprep.subr.bf16.mxu0 0
    %101 = vmatpush1.bf16.msra.mxu0 0
    %102 = vmatprep.subr.bf16.mxu0 0
    %103 = vmatpush1.bf16.msra.mxu0 0
    %104 = vmatprep.subr.bf16.mxu0 0
    %105 = vmatpush1.bf16.msra.mxu0 0
    %106 = vmatprep.subr.bf16.mxu0 0
    %107 = vmatpush1.bf16.msra.mxu0 0
    %108 = vmatprep.subr.bf16.mxu0 0
    %109 = vmatpush1.bf16.msra.mxu0 0
    %110 = vmatprep.subr.bf16.mxu0 0
    %111 = vmatpush1.bf16.msra.mxu0 0
    %112 = vmatprep.subr.bf16.mxu0 0
    %113 = vmatpush1.bf16.msra.mxu0 0
    %114 = vmatprep.subr.bf16.mxu0 0
    %115 = vmatpush1.bf16.msra.mxu0 0
    %116 = vmatprep.subr.bf16.mxu0 0
    %117 = vmatpush1.bf16.msra.mxu0 0
    %118 = vmatprep.subr.bf16.mxu0 0
    %119 = vmatpush1.bf16.msra.mxu0 0
    %120 = vmatprep.subr.bf16.mxu0 0
    %121 = vmatpush1.bf16.msra.mxu0 0
    %122 = vmatprep.subr.bf16.mxu0 0
    %123 = vmatpush1.bf16.msra.mxu0 0
    %124 = vmatprep.subr.bf16.mxu0 0
    %125 = vmatpush1.bf16.msra.mxu0 0
    %126 = vmatprep.subr.bf16.mxu0 0
    %127 = vmatpush1.bf16.msra.mxu0 0
    %128 = vmatprep.mubr.bf16.mxu0 0
    %129 = vmatmul.mubr.bf16.gmra.mrb[0].mxu0 %v94
    %v130 = vpop.f32.mrb[0].mxu0
    %v131 = vadd.f32 %v78, %v130
    %v132 = vpop.f32.mrb[0].mxu0
    %v133 = vpop.f32.mrb[0].mxu0
    %v134 = vpop.f32.mrb[0].mxu0
    %135 = vdwg.mxu0
    %v136 = vmax.f32 %v131, 0.0
    %v137 = vpack.c.bf16 %v136, %v136
    %v138 = vld [vmem:[#allocation7] sm:$0xf]
    %v139 = vld [vmem:[#allocation7 + $0x4] sm:$0xf]
    %v140 = vld [vmem:[#allocation7 + $0x8] sm:$0xf]
    %v141 = vld [vmem:[#allocation7 + $0xc] sm:$0xf]
    %v142 = vld [vmem:[#allocation7 + $0x10] sm:$0xf]
    %v143 = vld [vmem:[#allocation7 + $0x14] sm:$0xf]
    %v144 = vld [vmem:[#allocation7 + $0x18] sm:$0xf]
    %v145 = vld [vmem:[#allocation7 + $0x1c] sm:$0xf]
    %v146 = vld [vmem:[#allocation7 + $0x20] sm:$0xf]
    %v147 = vld [vmem:[#allocation7 + $0x24] sm:$0xf]
    %v148 = vld [vmem:[#allocation7 + $0x28] sm:$0xf]
    %v149 = vld [vmem:[#allocation7 + $0x2c] sm:$0xf]
    %v150 = vld [vmem:[#allocation7 + $0x30] sm:$0xf]
    %v151 = vld [vmem:[#allocation7 + $0x34] sm:$0xf]
    %v152 = vld [vmem:[#allocation7 + $0x38] sm:$0xf]
    %v153 = vld [vmem:[#allocation7 + $0x3c] sm:$0xf]
    %v154 = vld [vmem:[%s4] sm:$0x1]
    %v156 = vlaneseq
    %v157 = vshrl.u32 %v156, 7
    %v158 = vsub.s32 0, %v157
    %v159 = vrot.slane %v154, %v158
    %v177 = vunpack.c.l.b16 %v138
    %v178 = vunpack.c.l.b16 %v139
    %v179 = vunpack.c.l.b16 %v140
    %v180 = vunpack.c.l.b16 %v141
    %v181 = vunpack.c.l.b16 %v142
    %v182 = vunpack.c.l.b16 %v143
    %v183 = vunpack.c.l.b16 %v144
    %v184 = vunpack.c.l.b16 %v145
    %v185 = vunpack.c.l.b16 %v146
    %v186 = vunpack.c.l.b16 %v147
    %v187 = vunpack.c.l.b16 %v148
    %v188 = vunpack.c.l.b16 %v149
    %v189 = vunpack.c.l.b16 %v150
    %v190 = vunpack.c.l.b16 %v151
    %v191 = vunpack.c.l.b16 %v152
    %v192 = vunpack.c.l.b16 %v153
    %v193 = vpack.c.b16 %v178, %v177
    %v194 = vpack.c.b16 %v180, %v179
    %v195 = vpack.c.b16 %v182, %v181
    %v196 = vpack.c.b16 %v184, %v183
    %v197 = vpack.c.b16 %v186, %v185
    %v198 = vpack.c.b16 %v188, %v187
    %v199 = vpack.c.b16 %v190, %v189
    %v200 = vpack.c.b16 %v192, %v191
    %209 = vmatprep.subr.bf16.mxu0 0
    %210 = vmatpush1.bf16.msra.mxu0 %v193
    %211 = vmatprep.subr.bf16.mxu0 0
    %212 = vmatpush1.bf16.msra.mxu0 %v194
    %213 = vmatprep.subr.bf16.mxu0 0
    %214 = vmatpush1.bf16.msra.mxu0 %v195
    %215 = vmatprep.subr.bf16.mxu0 0
    %216 = vmatpush1.bf16.msra.mxu0 %v196
    %217 = vmatprep.subr.bf16.mxu0 0
    %218 = vmatpush1.bf16.msra.mxu0 %v197
    %219 = vmatprep.subr.bf16.mxu0 0
    %220 = vmatpush1.bf16.msra.mxu0 %v198
    %221 = vmatprep.subr.bf16.mxu0 0
    %222 = vmatpush1.bf16.msra.mxu0 %v199
    %223 = vmatprep.subr.bf16.mxu0 0
    %224 = vmatpush1.bf16.msra.mxu0 %v200
    %225 = vmatprep.subr.bf16.mxu0 0
    %226 = vmatpush1.bf16.msra.mxu0 0
    %227 = vmatprep.subr.bf16.mxu0 0
    %228 = vmatpush1.bf16.msra.mxu0 0
    %229 = vmatprep.subr.bf16.mxu0 0
    %230 = vmatpush1.bf16.msra.mxu0 0
    %231 = vmatprep.subr.bf16.mxu0 0
    %232 = vmatpush1.bf16.msra.mxu0 0
    %233 = vmatprep.subr.bf16.mxu0 0
    %234 = vmatpush1.bf16.msra.mxu0 0
    %235 = vmatprep.subr.bf16.mxu0 0
    %236 = vmatpush1.bf16.msra.mxu0 0
    %237 = vmatprep.subr.bf16.mxu0 0
    %238 = vmatpush1.bf16.msra.mxu0 0
    %239 = vmatprep.subr.bf16.mxu0 0
    %240 = vmatpush1.bf16.msra.mxu0 0
    %241 = vmatprep.mubr.bf16.mxu0 0
    %242 = vmatmul.mubr.bf16.gmra.mrb[0].mxu0 %v137
    %v243 = vpop.f32.mrb[0].mxu0
    %v244 = vadd.f32 %v159, %v243
    %v245 = vpop.f32.mrb[0].mxu0
    %v246 = vpop.f32.mrb[0].mxu0
    %v247 = vpop.f32.mrb[0].mxu0
    %248 = vdwg.mxu0
    %v249 = vmax.f32 %v244, 0.0
    %v250 = vld [vmem:[%s5] sm:$0x1]
    %v252 = vlaneseq
    %v253 = vshrl.u32 %v252, 7
    %v254 = vsub.s32 0, %v253
    %v255 = vrot.slane %v250, %v254
    %v257 = vmul.f32 %v249, %v255
    %258 = vadd.xlane.f32.xlu0 %v257
    %v259 = vpop.xlane.xlu0 %258
    %v260 = vld [vmem:[%s6] sm:$0x1]
    %v262 = vlaneseq
    %v263 = vshrl.u32 %v262, 7
    %v264 = vsub.s32 0, %v263
    %v265 = vrot.slane %v260, %v264
    %v267 = vadd.f32 %v259, %v265
    %vm268 = vcmask 64512
    %269 = vst.msk [vmem:[#allocation8] sm:$0xff] %vm268, %v267
    // Predicated region
    $region42: #{tpu_custom_call.1} parent=1 // pred_check
      _
    $region43: #{tpu_custom_call.1} parent=1 // pred_check_branch
      %271 = sbr.rel (0) target = $region45
    $region44: #{tpu_custom_call.1} parent=1 // pred_region
      %s273 = ssub.s32 128, 128
      %274 = vsyncadd [#allocation4], %s273
      %s276 = sshll.u32 [#allocation8], 4
      %s277 = int_to_ptr.vmem [resolvable:$true] %s276
      %279 = dma.vmem_to_hbm [thread:$0]  %s277, 128, %s7, [#allocation4]
    $region45: #{tpu_custom_call.1} parent=1 // pred_fallthru
      _
    // Predicated region
    $region46: #{tpu_custom_call.1} parent=1 // pred_check
      _
    $region47: #{tpu_custom_call.1} parent=1 // pred_check_branch
      %281 = sbr.rel (0) target = $region49
    $region48: #{tpu_custom_call.1} parent=1 // pred_region
      %282 = dma.done [#allocation4], 128
    $region49: #{tpu_custom_call.1} parent=1 // pred_fallthru
      _
    %283 = vsyncpa [#allocation3], 1
    %284 = vsyncpa [#allocation6], 1
    %285 = vsyncpa [#allocation4], 1

</llo_original>
